<compile_context>
chip_gen: v7x
topology: tpu7x:2x2x1
jax: 0.10.0
libtpu: 0.0.40
codegen_flags: <defaults>
</compile_context>

<pallas_src>
import math
from functools import partial

import jax
import jax.numpy as jnp
from jax import lax
from jax.experimental import pallas as pl
from jax.experimental.pallas import tpu as pltpu


def _segmented_softmax(s, seg, npack):
    """Softmax over each contiguous `seg`-lane group of the last dim of `s`.

    With image packing, lanes [g*seg, (g+1)*seg) hold image g's channels, so
    the channel softmax must never mix lane groups.
    """
    if npack == 1:
        m = jnp.max(s, axis=-1, keepdims=True)
        e = jnp.exp(s - m)
        return e / jnp.sum(e, axis=-1, keepdims=True)
    parts = []
    for g in range(npack):                       # npack is a small static int
        sg = s[:, g * seg:(g + 1) * seg]
        mg = jnp.max(sg, axis=-1, keepdims=True)
        eg = jnp.exp(sg - mg)
        parts.append(eg / jnp.sum(eg, axis=-1, keepdims=True))
    return jnp.concatenate(parts, axis=-1)


def self_attention_kernel(wq_ref, wk_ref, wv_ref, q_ref, k_ref, v_ref, o_ref,
                          q_scr, *, att_dim, chan, pack):
    # Block shapes:
    #   w*_ref : (PC, PC)        PC = pack*chan, block-diag, pre-transposed
    #   q_ref  : (1, TI, W, PC)  TI query rows of one packed image group
    #   k/v_ref: (1, H,  W, PC)  all key/value rows of the same group
    #   o_ref  : (1, TI, W, PC)
    #   q_scr  : (TI, W, PC) f32 VMEM scratch (dynamically row-indexable q)
    _, TI, W, PC = q_ref.shape
    H = k_ref.shape[1]
    scale = 1.0 / math.sqrt(att_dim)

    # ---- 1x1 convs: lane-dense (rows, PC) @ (PC, PC) MXU matmuls -----------
    # The reshapes only merge sublane-aligned leading dims (W == 8), so they
    # are layout no-ops.  Scale is folded into q (s = (q*scale) . k).
    qp = jnp.dot(q_ref[...].reshape(TI * W, PC), wq_ref[...],
                 preferred_element_type=jnp.float32)
    q_scr[...] = (qp * scale).reshape(TI, W, PC)
    k = jnp.dot(k_ref[...].reshape(H * W, PC), wk_ref[...],
                preferred_element_type=jnp.float32).reshape(H, W, PC)
    v = jnp.dot(v_ref[...].reshape(H * W, PC), wv_ref[...],
                preferred_element_type=jnp.float32).reshape(H, W, PC)

    # ---- attention: channel-lane-parallel VPU/XLU work, ~8-10 vregs live ---
    def row_body(i, carry):
        q_i = q_scr[i]                                         # (W, PC), 1 vreg
        # s_i[j, c] = sum_w q[i, w, c] * k[j, w, c]   (per-channel Q @ K^T)
        s_i = jnp.sum(q_i[None, :, :] * k, axis=1)             # (H, PC)
        # softmax over each image's channel group (torch softmax over dim=1)
        p_i = _segmented_softmax(s_i, chan, pack)              # (H, PC)
        # o_i[w, c] = sum_j p_i[j, c] * v[j, w, c]    (per-channel P @ V)
        o_i = jnp.sum(p_i[:, None, :] * v, axis=0)             # (W, PC)
        o_ref[0, i] = o_i.astype(o_ref.dtype)                  # unmasked 128-lane vst
        return carry

    lax.fori_loop(0, TI, row_body, 0)


def _block_diag_weight(w_t, pack):
    """(C, C) -> (pack*C, pack*C) block-diagonal (keeps packed images separate)."""
    if pack == 1:
        return w_t
    C = w_t.shape[0]
    out = jnp.zeros((pack * C, pack * C), w_t.dtype)
    for g in range(pack):
        out = out.at[g * C:(g + 1) * C, g * C:(g + 1) * C].set(w_t)
    return out


def _pack_channels_last(x, pack):
    """(B, C, H, W) -> (B//pack, H, W, pack*C); adjacent images share lanes."""
    B, C, H, W = x.shape
    if pack == 1:
        return jnp.transpose(x, (0, 2, 3, 1))
    x = x.reshape(B // pack, pack, C, H, W)
    x = jnp.transpose(x, (0, 3, 4, 1, 2))                # (Bp, H, W, pack, C)
    return x.reshape(B // pack, H, W, pack * C)


def _unpack_channels_first(y, pack, B, C, H, W):
    if pack == 1:
        return jnp.transpose(y, (0, 3, 1, 2))
    y = y.reshape(B // pack, H, W, pack, C)
    y = jnp.transpose(y, (0, 3, 4, 1, 2))                # (Bp, pack, C, H, W)
    return y.reshape(B, C, H, W)


@partial(jax.jit, static_argnames=("att_dim",))
def self_attention(query, keys, values, wq, wk, wv, *, att_dim):
    """query/keys/values: (B, C, H, W) NCHW; wq/wk/wv: (C_out, C_in) 1x1-conv weights."""
    B, C, H, W = query.shape

    # Pack pairs of images along the channel (lane) axis when possible so the
    # attention stage uses all 128 lanes and output stores are unmasked.
    pack = 2 if (B % 2 == 0 and 2 * C <= 128) else 1
    Bp, PC = B // pack, pack * C

    # Tile the query-row axis so the grid has >= 2 steps even when the whole
    # batch packs into one block (v7x megacore + DMA/compute overlap).
    TI = H // 2 if (H >= 2 and H % 2 == 0) else H
    n_it = H // TI

    q_cl = _pack_channels_last(query, pack)
    k_cl = _pack_channels_last(keys, pack)
    v_cl = _pack_channels_last(values, pack)
    wq_b = _block_diag_weight(wq.T, pack)
    wk_b = _block_diag_weight(wk.T, pack)
    wv_b = _block_diag_weight(wv.T, pack)

    kernel = partial(self_attention_kernel, att_dim=att_dim, chan=C, pack=pack)
    w_spec = pl.BlockSpec((PC, PC), lambda b, t: (0, 0))
    q_spec = pl.BlockSpec((1, TI, W, PC), lambda b, t: (b, t, 0, 0))
    kv_spec = pl.BlockSpec((1, H, W, PC), lambda b, t: (b, 0, 0, 0))
    o_spec = pl.BlockSpec((1, TI, W, PC), lambda b, t: (b, t, 0, 0))

    cost = pl.CostEstimate(
        flops=2 * B * (3 * C * C * H * W + 2 * C * H * H * W),
        transcendentals=B * C * H * H,
        bytes_accessed=4 * (4 * B * C * H * W + 3 * PC * PC),
    )

    out_cl = pl.pallas_call(
        kernel,
        out_shape=jax.ShapeDtypeStruct((Bp, H, W, PC), query.dtype),
        grid_spec=pltpu.PrefetchScalarGridSpec(
            num_scalar_prefetch=0,
            grid=(Bp, n_it),
            in_specs=[w_spec, w_spec, w_spec, q_spec, kv_spec, kv_spec],
            out_specs=o_spec,
            scratch_shapes=[pltpu.VMEM((TI, W, PC), jnp.float32)],
        ),
        compiler_params=pltpu.CompilerParams(
            dimension_semantics=("parallel", "parallel"),
            vmem_limit_bytes=16 * 1024 * 1024,
        ),
        cost_estimate=cost,
    )(wq_b, wk_b, wv_b, q_cl, k_cl, v_cl)

    return _unpack_channels_first(out_cl, pack, B, C, H, W)


def self_attention_ref(query, keys, values, wq, wk, wv, *, att_dim):
    """Pure-JAX reference mirroring the PyTorch forward exactly (NCHW)."""
    hp = jax.lax.Precision.HIGHEST
    q = jnp.einsum('oc,bchw->bohw', wq, query, precision=hp)
    k = jnp.einsum('oc,bchw->bohw', wk, keys, precision=hp)
    v = jnp.einsum('oc,bchw->bohw', wv, values, precision=hp)
    s = jnp.einsum('bciw,bcjw->bcij', q, k, precision=hp) / math.sqrt(att_dim)
    p = jax.nn.softmax(s, axis=1)          # softmax over channel dim, as in torch
    return jnp.einsum('bcij,bcjw->bciw', p, v, precision=hp)


if __name__ == "__main__":
    B, C, H, W = 2, 64, 8, 8               # att_dim = 64 (module default)

    key = jax.random.PRNGKey(0)
    k1, k2, k3, k4, k5, k6 = jax.random.split(key, 6)
    query = jax.random.normal(k1, (B, C, H, W), jnp.float32)
    keys = jax.random.normal(k2, (B, C, H, W), jnp.float32)
    values = jax.random.normal(k3, (B, C, H, W), jnp.float32)

    # Deterministic weights, ~ torch Conv2d default init bound (1/sqrt(fan_in)).
    # The torch module uses bias=False for all three convs, so no biases needed.
    bound = 1.0 / math.sqrt(C)
    wq = jax.random.uniform(k4, (C, C), jnp.float32, -bound, bound)
    wk = jax.random.uniform(k5, (C, C), jnp.float32, -bound, bound)
    wv = jax.random.uniform(k6, (C, C), jnp.float32, -bound, bound)

    out = self_attention(query, keys, values, wq, wk, wv, att_dim=C)
    out = jax.block_until_ready(out)

    ref = self_attention_ref(query, keys, values, wq, wk, wv, att_dim=C)
    assert out.shape == (B, C, H, W)
    max_err = float(jnp.max(jnp.abs(out - ref)))
    assert jnp.allclose(out, ref, atol=2e-3, rtol=2e-3), max_err

    print("KERNEL_OK")
</pallas_src>

<mosaic_0001>
module attributes {stable_mosaic.version = 11 : i64} {
  func.func @self_attention_kernel(%arg0: i32, %arg1: i32, %arg2: memref<128x128xf32, #tpu.memory_space<vmem>>, %arg3: memref<128x128xf32, #tpu.memory_space<vmem>>, %arg4: memref<128x128xf32, #tpu.memory_space<vmem>>, %arg5: memref<1x4x8x128xf32, #tpu.memory_space<vmem>>, %arg6: memref<1x8x8x128xf32, #tpu.memory_space<vmem>>, %arg7: memref<1x8x8x128xf32, #tpu.memory_space<vmem>>, %arg8: memref<1x4x8x128xf32, #tpu.memory_space<vmem>>, %arg9: memref<4x8x128xf32, #tpu.memory_space<vmem>>) attributes {dimension_semantics = [#tpu.dimension_semantics<parallel>, #tpu.dimension_semantics<parallel>], iteration_bounds = array<i64: 1, 2>, scalar_prefetch = 0 : i64, scratch_operands = 1 : i64, tpu.core_type = #tpu.core_type<tc>, window_params = [{pipeline_mode = #tpu.pipeline_mode<synchronous>, transform_indices = @transform_0, window_bounds = array<i64: 128, 128>}, {pipeline_mode = #tpu.pipeline_mode<synchronous>, transform_indices = @transform_1, window_bounds = array<i64: 128, 128>}, {pipeline_mode = #tpu.pipeline_mode<synchronous>, transform_indices = @transform_2, window_bounds = array<i64: 128, 128>}, {transform_indices = @transform_3, window_bounds = array<i64: 1, 4, 8, 128>}, {transform_indices = @transform_4, window_bounds = array<i64: 1, 8, 8, 128>}, {transform_indices = @transform_5, window_bounds = array<i64: 1, 8, 8, 128>}, {transform_indices = @transform_6, window_bounds = array<i64: 1, 4, 8, 128>}]} {
    %c0 = arith.constant 0 : index
    %c0_0 = arith.constant 0 : index
    %c0_1 = arith.constant 0 : index
    %c0_2 = arith.constant 0 : index
    %0 = vector.load %arg5[%c0, %c0_0, %c0_1, %c0_2] : memref<1x4x8x128xf32, #tpu.memory_space<vmem>>, vector<1x4x8x128xf32>
    %1 = vector.shape_cast %0 : vector<1x4x8x128xf32> to vector<32x128xf32>
    %c0_3 = arith.constant 0 : index
    %c0_4 = arith.constant 0 : index
    %2 = vector.load %arg2[%c0_3, %c0_4] : memref<128x128xf32, #tpu.memory_space<vmem>>, vector<128x128xf32>
    %cst = arith.constant dense<0.000000e+00> : vector<32x128xf32>
    %3 = tpu.matmul %1, %2, %cst {dimension_numbers = #tpu.dot_dimension_numbers<[1], [0], [0], [1], [0, 0, 1, 1], [], []>} : vector<32x128xf32>, vector<128x128xf32>, vector<32x128xf32> -> vector<32x128xf32>
    %cst_5 = arith.constant 1.250000e-01 : f32
    %4 = vector.broadcast %cst_5 : f32 to vector<32x128xf32>
    %5 = arith.mulf %3, %4 : vector<32x128xf32>
    %6 = vector.shape_cast %5 : vector<32x128xf32> to vector<4x8x128xf32>
    %c0_6 = arith.constant 0 : index
    %c0_7 = arith.constant 0 : index
    %c0_8 = arith.constant 0 : index
    %7 = vector.load %arg9[%c0_6, %c0_7, %c0_8] : memref<4x8x128xf32, #tpu.memory_space<vmem>>, vector<4x8x128xf32>
    tpu.vector_store %arg9[%c0_6, %c0_7, %c0_8], %6 {strides = array<i32>} : memref<4x8x128xf32, #tpu.memory_space<vmem>>, vector<4x8x128xf32>,
    %c0_9 = arith.constant 0 : index
    %c0_10 = arith.constant 0 : index
    %c0_11 = arith.constant 0 : index
    %c0_12 = arith.constant 0 : index
    %8 = vector.load %arg6[%c0_9, %c0_10, %c0_11, %c0_12] : memref<1x8x8x128xf32, #tpu.memory_space<vmem>>, vector<1x8x8x128xf32>
    %9 = vector.shape_cast %8 : vector<1x8x8x128xf32> to vector<64x128xf32>
    %c0_13 = arith.constant 0 : index
    %c0_14 = arith.constant 0 : index
    %10 = vector.load %arg3[%c0_13, %c0_14] : memref<128x128xf32, #tpu.memory_space<vmem>>, vector<128x128xf32>
    %cst_15 = arith.constant dense<0.000000e+00> : vector<64x128xf32>
    %11 = tpu.matmul %9, %10, %cst_15 {dimension_numbers = #tpu.dot_dimension_numbers<[1], [0], [0], [1], [0, 0, 1, 1], [], []>} : vector<64x128xf32>, vector<128x128xf32>, vector<64x128xf32> -> vector<64x128xf32>
    %12 = vector.shape_cast %11 : vector<64x128xf32> to vector<8x8x128xf32>
    %c0_16 = arith.constant 0 : index
    %c0_17 = arith.constant 0 : index
    %c0_18 = arith.constant 0 : index
    %c0_19 = arith.constant 0 : index
    %13 = vector.load %arg7[%c0_16, %c0_17, %c0_18, %c0_19] : memref<1x8x8x128xf32, #tpu.memory_space<vmem>>, vector<1x8x8x128xf32>
    %14 = vector.shape_cast %13 : vector<1x8x8x128xf32> to vector<64x128xf32>
    %c0_20 = arith.constant 0 : index
    %c0_21 = arith.constant 0 : index
    %15 = vector.load %arg4[%c0_20, %c0_21] : memref<128x128xf32, #tpu.memory_space<vmem>>, vector<128x128xf32>
    %cst_22 = arith.constant dense<0.000000e+00> : vector<64x128xf32>
    %16 = tpu.matmul %14, %15, %cst_22 {dimension_numbers = #tpu.dot_dimension_numbers<[1], [0], [0], [1], [0, 0, 1, 1], [], []>} : vector<64x128xf32>, vector<128x128xf32>, vector<64x128xf32> -> vector<64x128xf32>
    %17 = vector.shape_cast %16 : vector<64x128xf32> to vector<8x8x128xf32>
    %c0_i32 = arith.constant 0 : i32
    %c4_i32 = arith.constant 4 : i32
    %18 = arith.addi %c0_i32, %c4_i32 : i32
    %c1_i32 = arith.constant 1 : i32
    scf.for %arg10 = %c0_i32 to %18 step %c1_i32  : i32 {
      %19 = arith.index_cast %arg10 : i32 to index
      %c0_24 = arith.constant 0 : index
      %c0_25 = arith.constant 0 : index
      %20 = vector.load %arg9[%19, %c0_24, %c0_25] : memref<4x8x128xf32, #tpu.memory_space<vmem>>, vector<1x8x128xf32>
      %21 = vector.shape_cast %20 : vector<1x8x128xf32> to vector<8x128xf32>
      %22 = vector.shape_cast %21 : vector<8x128xf32> to vector<1x8x128xf32>
      %23 = vector.broadcast %22 : vector<1x8x128xf32> to vector<8x8x128xf32>
      %24 = arith.mulf %23, %12 : vector<8x8x128xf32>
      %cst_26 = arith.constant dense<0.000000e+00> : vector<8x128xf32>
      %25 = vector.multi_reduction <add>, %24, %cst_26 [1] : vector<8x8x128xf32> to vector<8x128xf32>
      %26 = vector.extract_strided_slice %25 {offsets = [0, 0], sizes = [8, 64], strides = [1, 1]} : vector<8x128xf32> to vector<8x64xf32>
      %cst_27 = arith.constant dense<0xFF800000> : vector<8xf32>
      %27 = vector.multi_reduction <maximumf>, %26, %cst_27 [1] : vector<8x64xf32> to vector<8xf32>
      %28 = vector.shape_cast %27 : vector<8xf32> to vector<8x1xf32>
      %29 = vector.broadcast %28 : vector<8x1xf32> to vector<8x64xf32>
      %30 = arith.subf %26, %29 : vector<8x64xf32>
      %31 = math.exp %30 : vector<8x64xf32>
      %cst_28 = arith.constant dense<0.000000e+00> : vector<8xf32>
      %32 = vector.multi_reduction <add>, %31, %cst_28 [1] : vector<8x64xf32> to vector<8xf32>
      %33 = vector.shape_cast %32 : vector<8xf32> to vector<8x1xf32>
      %34 = vector.broadcast %33 : vector<8x1xf32> to vector<8x64xf32>
      %35 = arith.divf %31, %34 : vector<8x64xf32>
      %36 = vector.extract_strided_slice %25 {offsets = [0, 64], sizes = [8, 64], strides = [1, 1]} : vector<8x128xf32> to vector<8x64xf32>
      %cst_29 = arith.constant dense<0xFF800000> : vector<8xf32>
      %37 = vector.multi_reduction <maximumf>, %36, %cst_29 [1] : vector<8x64xf32> to vector<8xf32>
      %38 = vector.shape_cast %37 : vector<8xf32> to vector<8x1xf32>
      %39 = vector.broadcast %38 : vector<8x1xf32> to vector<8x64xf32>
      %40 = arith.subf %36, %39 : vector<8x64xf32>
      %41 = math.exp %40 : vector<8x64xf32>
      %cst_30 = arith.constant dense<0.000000e+00> : vector<8xf32>
      %42 = vector.multi_reduction <add>, %41, %cst_30 [1] : vector<8x64xf32> to vector<8xf32>
      %43 = vector.shape_cast %42 : vector<8xf32> to vector<8x1xf32>
      %44 = vector.broadcast %43 : vector<8x1xf32> to vector<8x64xf32>
      %45 = arith.divf %41, %44 : vector<8x64xf32>
      %46 = tpu.concatenate %35, %45 in 1 : vector<8x64xf32>, vector<8x64xf32> -> vector<8x128xf32>
      %47 = vector.shape_cast %46 : vector<8x128xf32> to vector<8x1x128xf32>
      %48 = vector.broadcast %47 : vector<8x1x128xf32> to vector<8x8x128xf32>
      %49 = arith.mulf %48, %17 : vector<8x8x128xf32>
      %cst_31 = arith.constant dense<0.000000e+00> : vector<8x128xf32>
      %50 = vector.multi_reduction <add>, %49, %cst_31 [0] : vector<8x8x128xf32> to vector<8x128xf32>
      %c0_32 = arith.constant 0 : index
      %51 = arith.index_cast %arg10 : i32 to index
      %c0_33 = arith.constant 0 : index
      %c0_34 = arith.constant 0 : index
      %52 = vector.load %arg8[%c0_32, %51, %c0_33, %c0_34] : memref<1x4x8x128xf32, #tpu.memory_space<vmem>>, vector<1x1x8x128xf32>
      %53 = vector.shape_cast %52 : vector<1x1x8x128xf32> to vector<8x128xf32>
      %54 = vector.shape_cast %50 : vector<8x128xf32> to vector<1x1x8x128xf32>
      tpu.vector_store %arg8[%c0_32, %51, %c0_33, %c0_34], %54 {strides = array<i32>} : memref<1x4x8x128xf32, #tpu.memory_space<vmem>>, vector<1x1x8x128xf32>,
    }
    %c4_i32_23 = arith.constant 4 : i32
    return
  }
  func.func @transform_0(%arg0: i32, %arg1: i32) -> (i32, i32) {
    %c0_i32 = arith.constant 0 : i32
    %c0_i32_0 = arith.constant 0 : i32
    %c0_i32_1 = arith.constant 0 : i32
    return %c0_i32, %c0_i32_0 : i32, i32
  }
  func.func @transform_1(%arg0: i32, %arg1: i32) -> (i32, i32) {
    %c0_i32 = arith.constant 0 : i32
    %c0_i32_0 = arith.constant 0 : i32
    %c0_i32_1 = arith.constant 0 : i32
    return %c0_i32, %c0_i32_0 : i32, i32
  }
  func.func @transform_2(%arg0: i32, %arg1: i32) -> (i32, i32) {
    %c0_i32 = arith.constant 0 : i32
    %c0_i32_0 = arith.constant 0 : i32
    %c0_i32_1 = arith.constant 0 : i32
    return %c0_i32, %c0_i32_0 : i32, i32
  }
  func.func @transform_3(%arg0: i32, %arg1: i32) -> (i32, i32, i32, i32) {
    %c0_i32 = arith.constant 0 : i32
    %c0_i32_0 = arith.constant 0 : i32
    %c0_i32_1 = arith.constant 0 : i32
    return %arg0, %arg1, %c0_i32, %c0_i32_0 : i32, i32, i32, i32
  }
  func.func @transform_4(%arg0: i32, %arg1: i32) -> (i32, i32, i32, i32) {
    %c0_i32 = arith.constant 0 : i32
    %c0_i32_0 = arith.constant 0 : i32
    %c0_i32_1 = arith.constant 0 : i32
    %c0_i32_2 = arith.constant 0 : i32
    return %arg0, %c0_i32, %c0_i32_0, %c0_i32_1 : i32, i32, i32, i32
  }
  func.func @transform_5(%arg0: i32, %arg1: i32) -> (i32, i32, i32, i32) {
    %c0_i32 = arith.constant 0 : i32
    %c0_i32_0 = arith.constant 0 : i32
    %c0_i32_1 = arith.constant 0 : i32
    %c0_i32_2 = arith.constant 0 : i32
    return %arg0, %c0_i32, %c0_i32_0, %c0_i32_1 : i32, i32, i32, i32
  }
  func.func @transform_6(%arg0: i32, %arg1: i32) -> (i32, i32, i32, i32) {
    %c0_i32 = arith.constant 0 : i32
    %c0_i32_0 = arith.constant 0 : i32
    %c0_i32_1 = arith.constant 0 : i32
    return %arg0, %arg1, %c0_i32, %c0_i32_0 : i32, i32, i32, i32
  }
}

</mosaic_0001>

<llo_original>
// kernel: self_attention.1
$region0: #{self_attention.1}
  #allocation0 [shape = 'u32[]', space=smem, size = 0x4, offset = 0x4, fixed_abs, tag = 'smem constant byte address 0x4 - core index']
  #allocation1 [shape = 'u32[144,128]{1,0:T(1,128)}', space=vmem, size = 0x12000, scoped, tag = 'internal scratch']
  #allocation2 [shape = 'f32[4,8,128]{2,1,0:T(8,128)}', space=vmem, size = 0x4000, scoped, tag = 'scratch operand']
  %s0 = inlined_call_operand.vmem [shape: f32[128,128], index: 0, kind: input, shape index: {}]
  %s1 = inlined_call_operand.vmem [shape: f32[128,128], index: 1, kind: input, shape index: {}]
  %s2 = inlined_call_operand.vmem [shape: f32[128,128], index: 2, kind: input, shape index: {}]
  %s3 = inlined_call_operand.vmem [shape: f32[1,8,8,128], index: 3, kind: input, shape index: {}]
  %s4 = inlined_call_operand.vmem [shape: f32[1,8,8,128], index: 4, kind: input, shape index: {}]
  %s5 = inlined_call_operand.vmem [shape: f32[1,8,8,128], index: 5, kind: input, shape index: {}]
  %s6 = inlined_call_operand.vmem [shape: f32[1,8,8,128], index: 6, kind: output, shape index: {}]
  %s7 = sld [smem:[#allocation0]]
  $region64: #{self_attention.1} parent=0
    _
  %s9 = ssub.s32 1, %s7
  %s10 = scalar_select 0, %s9, %s7
  loop: start=0, step=1, limit=4
  $region2: #{self_attention.1} parent=0 // loop_pre_header
    _
  $region3: #{self_attention.1} parent=0 // loop_header
    %s12 = sphi 0, %s16
    %p13 = scmp.ge.s32.totalorder %s12, 4
    %s19 = sphi 0, %s31
    %s20 = sphi 0, %s27
    %s21 = sphi 0, %s19
    %s22 = sphi 0, %s20
    %s23 = sphi 0, %s21
    %s24 = sphi 0, %s22
    %s32 = sphi 0, %s32
    %s34 = sphi 0, %s32
    %s35 = sphi 0, %s34
    %s49 = sphi 0, %s35
    %s53 = sphi 0, %s53
    %s55 = sphi 0, %s53
    %s56 = sphi 0, %s55
    %s70 = sphi 0, %s56
    %s74 = sphi 0, %s74
    %s76 = sphi 0, %s74
    %s77 = sphi 0, %s76
    %s91 = sphi 0, %s77
    %s99 = sphi 0, %s101
    %s102 = sphi 0, %s99
    %s103 = sphi 0, %s102
    %s119 = sphi 0, %s103
    %s125 = sphi 0, %s127
    %s128 = sphi 0, %s125
    %s129 = sphi 0, %s128
    %s145 = sphi 0, %s129
    %s151 = sphi 0, %s153
    %s154 = sphi 0, %s151
    %s155 = sphi 0, %s154
    %s171 = sphi 0, %s155
    %s179 = sphi 0, %s181
    %s182 = sphi 0, %s179
    %s183 = sphi 0, %s182
    %s199 = sphi 0, %s183
  $region4: #{self_attention.1} parent=0 // loop_header_branch
    %15 = sbr.rel (%p13) target = $region8
  $region5: #{self_attention.1} parent=0 // loop_body
    %s17 = ssub.s32 %s12, 1
    %s18 = ssub.s32 %s12, 2
    %s25 = sadd.s32 1, %s20
    %p26 = scmp.ge.s32.totalorder %s25, 2
    %s27 = scalar_select %p26, 0, %s25
    %s28 = sadd.s32 1, %s19
    %s29 = scalar_select %p26, %s28, %s19
    %p30 = scmp.ge.s32.totalorder %s29, 1
    %s31 = scalar_select %p30, 0, %s29
    %s33 = sadd.s32 %s32, 1
    %p36 = scmp.eq.s32.totalorder %s12, 1
    %p37 = scmp.ne.s32.totalorder %s32, %s34
    %p38 = scmp.eq.s32.totalorder %s12, 0
    %p39 = por %p37, %p38
    %p40 = scmp.ne.s32.totalorder %s32, %s34
    %p41 = scmp.eq.s32.totalorder %s17, 1
    %p42 = por %p40, %p41
    %p43 = scmp.ne.s32.totalorder %s34, %s35
    %p44 = scmp.eq.s32.totalorder %s17, 0
    %p45 = por %p43, %p44
    %p46 = scmp.ne.s32.totalorder %s34, %s35
    %p47 = scmp.eq.s32.totalorder %s18, 1
    %p48 = por %p46, %p47
    %p50 = scmp.ne.s32.totalorder %s35, %s49
    %p51 = scmp.eq.s32.totalorder %s18, 0
    %p52 = por %p50, %p51
    %s54 = sadd.s32 %s53, 1
    %p57 = scmp.eq.s32.totalorder %s12, 1
    %p58 = scmp.ne.s32.totalorder %s53, %s55
    %p59 = scmp.eq.s32.totalorder %s12, 0
    %p60 = por %p58, %p59
    %p61 = scmp.ne.s32.totalorder %s53, %s55
    %p62 = scmp.eq.s32.totalorder %s17, 1
    %p63 = por %p61, %p62
    %p64 = scmp.ne.s32.totalorder %s55, %s56
    %p65 = scmp.eq.s32.totalorder %s17, 0
    %p66 = por %p64, %p65
    %p67 = scmp.ne.s32.totalorder %s55, %s56
    %p68 = scmp.eq.s32.totalorder %s18, 1
    %p69 = por %p67, %p68
    %p71 = scmp.ne.s32.totalorder %s56, %s70
    %p72 = scmp.eq.s32.totalorder %s18, 0
    %p73 = por %p71, %p72
    %s75 = sadd.s32 %s74, 1
    %p78 = scmp.eq.s32.totalorder %s12, 1
    %p79 = scmp.ne.s32.totalorder %s74, %s76
    %p80 = scmp.eq.s32.totalorder %s12, 0
    %p81 = por %p79, %p80
    %p82 = scmp.ne.s32.totalorder %s74, %s76
    %p83 = scmp.eq.s32.totalorder %s17, 1
    %p84 = por %p82, %p83
    %p85 = scmp.ne.s32.totalorder %s76, %s77
    %p86 = scmp.eq.s32.totalorder %s17, 0
    %p87 = por %p85, %p86
    %p88 = scmp.ne.s32.totalorder %s76, %s77
    %p89 = scmp.eq.s32.totalorder %s18, 1
    %p90 = por %p88, %p89
    %p92 = scmp.ne.s32.totalorder %s77, %s91
    %p93 = scmp.eq.s32.totalorder %s18, 0
    %p94 = por %p92, %p93
    %s95 = ssub.s32 %s19, %s31
    %s96 = ssub.s32 %s20, %s27
    %s97 = sor.u32 %s95, %s96
    %p98 = scmp.eq.s32.totalorder %s97, 0
    %s100 = sadd.s32 %s99, 1
    %s101 = scalar_select %p98, %s99, %s100
    %p104 = pneg %p98
    %p105 = scmp.eq.s32.totalorder %s12, 1
    %p106 = por %p104, %p105
    %p107 = scmp.ne.s32.totalorder %s99, %s102
    %p108 = scmp.eq.s32.totalorder %s12, 0
    %p109 = por %p107, %p108
    %p110 = scmp.ne.s32.totalorder %s99, %s102
    %p111 = scmp.eq.s32.totalorder %s17, 1
    %p112 = por %p110, %p111
    %p113 = scmp.ne.s32.totalorder %s102, %s103
    %p114 = scmp.eq.s32.totalorder %s17, 0
    %p115 = por %p113, %p114
    %p116 = scmp.ne.s32.totalorder %s102, %s103
    %p117 = scmp.eq.s32.totalorder %s18, 1
    %p118 = por %p116, %p117
    %p120 = scmp.ne.s32.totalorder %s103, %s119
    %p121 = scmp.eq.s32.totalorder %s18, 0
    %p122 = por %p120, %p121
    %s123 = ssub.s32 %s19, %s31
    %p124 = scmp.eq.s32.totalorder %s123, 0
    %s126 = sadd.s32 %s125, 1
    %s127 = scalar_select %p124, %s125, %s126
    %p130 = pneg %p124
    %p131 = scmp.eq.s32.totalorder %s12, 1
    %p132 = por %p130, %p131
    %p133 = scmp.ne.s32.totalorder %s125, %s128
    %p134 = scmp.eq.s32.totalorder %s12, 0
    %p135 = por %p133, %p134
    %p136 = scmp.ne.s32.totalorder %s125, %s128
    %p137 = scmp.eq.s32.totalorder %s17, 1
    %p138 = por %p136, %p137
    %p139 = scmp.ne.s32.totalorder %s128, %s129
    %p140 = scmp.eq.s32.totalorder %s17, 0
    %p141 = por %p139, %p140
    %p142 = scmp.ne.s32.totalorder %s128, %s129
    %p143 = scmp.eq.s32.totalorder %s18, 1
    %p144 = por %p142, %p143
    %p146 = scmp.ne.s32.totalorder %s129, %s145
    %p147 = scmp.eq.s32.totalorder %s18, 0
    %p148 = por %p146, %p147
    %s149 = ssub.s32 %s19, %s31
    %p150 = scmp.eq.s32.totalorder %s149, 0
    %s152 = sadd.s32 %s151, 1
    %s153 = scalar_select %p150, %s151, %s152
    %p156 = pneg %p150
    %p157 = scmp.eq.s32.totalorder %s12, 1
    %p158 = por %p156, %p157
    %p159 = scmp.ne.s32.totalorder %s151, %s154
    %p160 = scmp.eq.s32.totalorder %s12, 0
    %p161 = por %p159, %p160
    %p162 = scmp.ne.s32.totalorder %s151, %s154
    %p163 = scmp.eq.s32.totalorder %s17, 1
    %p164 = por %p162, %p163
    %p165 = scmp.ne.s32.totalorder %s154, %s155
    %p166 = scmp.eq.s32.totalorder %s17, 0
    %p167 = por %p165, %p166
    %p168 = scmp.ne.s32.totalorder %s154, %s155
    %p169 = scmp.eq.s32.totalorder %s18, 1
    %p170 = por %p168, %p169
    %p172 = scmp.ne.s32.totalorder %s155, %s171
    %p173 = scmp.eq.s32.totalorder %s18, 0
    %p174 = por %p172, %p173
    %s175 = ssub.s32 %s19, %s31
    %s176 = ssub.s32 %s20, %s27
    %s177 = sor.u32 %s175, %s176
    %p178 = scmp.eq.s32.totalorder %s177, 0
    %s180 = sadd.s32 %s179, 1
    %s181 = scalar_select %p178, %s179, %s180
    %p184 = pneg %p178
    %p185 = scmp.eq.s32.totalorder %s12, 1
    %p186 = por %p184, %p185
    %p187 = scmp.ne.s32.totalorder %s179, %s182
    %p188 = scmp.eq.s32.totalorder %s12, 0
    %p189 = por %p187, %p188
    %p190 = scmp.ne.s32.totalorder %s179, %s182
    %p191 = scmp.eq.s32.totalorder %s17, 1
    %p192 = por %p190, %p191
    %p193 = scmp.ne.s32.totalorder %s182, %s183
    %p194 = scmp.eq.s32.totalorder %s17, 0
    %p195 = por %p193, %p194
    %p196 = scmp.ne.s32.totalorder %s182, %s183
    %p197 = scmp.eq.s32.totalorder %s18, 1
    %p198 = por %p196, %p197
    %p200 = scmp.ne.s32.totalorder %s183, %s199
    %p201 = scmp.eq.s32.totalorder %s18, 0
    %p202 = por %p200, %p201
    %p203 = scmp.le.s32.totalorder 1, %s12
    %p204 = scmp.lt.s32.totalorder %s12, 3
    %p205 = pnand %p203, %p204
    %p206 = pneg %p205
    // Predicated region
    $region9: #{self_attention.1} parent=5 // pred_check
      _
    $region10: #{self_attention.1} parent=5 // pred_check_branch
      %208 = sbr.rel (%p205) target = $region12
    $region11: #{self_attention.1} parent=5 // pred_region
      %s209 = ssub.s32 %s12, 1
      // Predicated region
      $region13: #{self_attention.1} parent=11 // pred_check
        %p210 = pneg %p45
      $region14: #{self_attention.1} parent=11 // pred_check_branch
        %212 = sbr.rel (%p210) target = $region16
      $region15: #{self_attention.1} parent=11 // pred_region
        _
      $region16: #{self_attention.1} parent=11 // pred_fallthru
        _
      // Predicated region
      $region17: #{self_attention.1} parent=11 // pred_check
        %p213 = pneg %p66
      $region18: #{self_attention.1} parent=11 // pred_check_branch
        %215 = sbr.rel (%p213) target = $region20
      $region19: #{self_attention.1} parent=11 // pred_region
        _
      $region20: #{self_attention.1} parent=11 // pred_fallthru
        _
      // Predicated region
      $region21: #{self_attention.1} parent=11 // pred_check
        %p216 = pneg %p87
      $region22: #{self_attention.1} parent=11 // pred_check_branch
        %218 = sbr.rel (%p216) target = $region24
      $region23: #{self_attention.1} parent=11 // pred_region
        _
      $region24: #{self_attention.1} parent=11 // pred_fallthru
        _
      // Predicated region
      $region25: #{self_attention.1} parent=11 // pred_check
        %p219 = pneg %p141
      $region26: #{self_attention.1} parent=11 // pred_check_branch
        %221 = sbr.rel (%p219) target = $region28
      $region27: #{self_attention.1} parent=11 // pred_region
        %p222 = scmp.lt.s32.totalorder %s21, 0
        %s223 = scalar_select %p222, %s21, 0
        %s224 = smul.addr %s223, 8
        %s225 = smul.addr %s224, 8
        %s226 = scalar_lea.vmem %s4, %s225
      $region28: #{self_attention.1} parent=11 // pred_fallthru
        _
      // Predicated region
      $region29: #{self_attention.1} parent=11 // pred_check
        %p227 = pneg %p167
      $region30: #{self_attention.1} parent=11 // pred_check_branch
        %229 = sbr.rel (%p227) target = $region32
      $region31: #{self_attention.1} parent=11 // pred_region
        %p230 = scmp.lt.s32.totalorder %s21, 0
        %s231 = scalar_select %p230, %s21, 0
        %s232 = smul.addr %s231, 8
        %s233 = smul.addr %s232, 8
        %s234 = scalar_lea.vmem %s5, %s233
      $region32: #{self_attention.1} parent=11 // pred_fallthru
        _
    $region12: #{self_attention.1} parent=5 // pred_fallthru
      _
    %p235 = scmp.lt.s32.totalorder %s12, 2
    // Predicated region
    $region33: #{self_attention.1} parent=5 // pred_check
      %p236 = pneg %p235
    $region34: #{self_attention.1} parent=5 // pred_check_branch
      %238 = sbr.rel (%p236) target = $region36
    $region35: #{self_attention.1} parent=5 // pred_region
      // Predicated region
      $region37: #{self_attention.1} parent=35 // pred_check
        %p239 = pneg %p109
      $region38: #{self_attention.1} parent=35 // pred_check_branch
        %241 = sbr.rel (%p239) target = $region40
      $region39: #{self_attention.1} parent=35 // pred_region
        %s242 = smul.u32 4, %s20
        %p243 = scmp.lt.s32.totalorder %s19, 0
        %s244 = scalar_select %p243, %s19, 0
        %p245 = scmp.lt.s32.totalorder %s242, 7
        %s246 = scalar_select %p245, %s242, 7
        %s247 = smul.addr %s244, 8
        %s248 = sadd.s32 %s246, %s247
        %s249 = smul.addr %s248, 8
        %s250 = scalar_lea.vmem %s3, %s249
        %s251 = smul.u32 4, %s20
      $region40: #{self_attention.1} parent=35 // pred_fallthru
        _
    $region36: #{self_attention.1} parent=5 // pred_fallthru
      _
    %p252 = scmp.le.s32.totalorder 1, %s12
    %p253 = scmp.lt.s32.totalorder %s12, 3
    %p254 = pnand %p252, %p253
    %p255 = pneg %p254
    // Predicated region
    $region41: #{self_attention.1} parent=5 // pred_check
      _
    $region42: #{self_attention.1} parent=5 // pred_check_branch
      %257 = sbr.rel (%p254) target = $region44
    $region43: #{self_attention.1} parent=5 // pred_region
      %s258 = ssub.s32 %s12, 1
      %p259 = pneg %p45
      %p260 = pneg %p42
      %p261 = pneg %p66
      %p262 = pneg %p63
      %p263 = pneg %p87
      %p264 = pneg %p84
      %s265 = smul.u32 4, %s22
      %p266 = scmp.lt.s32.totalorder %s21, 0
      %s267 = scalar_select %p266, %s21, 0
      %p268 = scmp.lt.s32.totalorder %s265, 7
      %s269 = scalar_select %p268, %s265, 7
      %s270 = smul.addr %s267, 8
      %s271 = sadd.s32 %s269, %s270
      %s272 = smul.addr %s271, 8
      %s273 = scalar_lea.vmem %s3, %s272
      %p274 = pneg %p115
      %p275 = pneg %p112
      %p276 = scmp.lt.s32.totalorder %s21, 0
      %s277 = scalar_select %p276, %s21, 0
      %s278 = smul.addr %s277, 8
      %s279 = smul.addr %s278, 8
      %s280 = scalar_lea.vmem %s4, %s279
      %p281 = pneg %p141
      %p282 = pneg %p138
      %p283 = scmp.lt.s32.totalorder %s21, 0
      %s284 = scalar_select %p283, %s21, 0
      %s285 = smul.addr %s284, 8
      %s286 = smul.addr %s285, 8
      %s287 = scalar_lea.vmem %s5, %s286
      %p288 = pneg %p167
      %p289 = pneg %p164
      %p290 = pneg %p195
      %p291 = pneg %p192
      %s292 = smul.u32 4, %s22
      %p293 = scmp.lt.s32.totalorder %s21, 0
      %s294 = scalar_select %p293, %s21, 0
      %p295 = scmp.lt.s32.totalorder %s292, 7
      %s296 = scalar_select %p295, %s292, 7
      %s297 = smul.addr %s294, 8
      %s298 = sadd.s32 %s296, %s297
      %s299 = smul.addr %s298, 8
      %s300 = scalar_lea.vmem %s6, %s299
      %s301 = smul.u32 4, %s22
      %p302 = scmp.lt.s32.totalorder %s21, 0
      %s303 = scalar_select %p302, %s21, 0
      %p304 = scmp.lt.s32.totalorder %s301, 7
      %s305 = scalar_select %p304, %s301, 7
      %s306 = smul.addr %s303, 8
      %s307 = sadd.s32 %s305, %s306
      %s308 = smul.addr %s307, 8
      %s309 = scalar_lea.vmem %s3, %s308
      %s310 = smul.u32 4, %s22
      %p311 = scmp.lt.s32.totalorder %s21, 0
      %s312 = scalar_select %p311, %s21, 0
      %s313 = smul.addr %s312, 8
      %s314 = smul.addr %s313, 8
      %s315 = scalar_lea.vmem %s4, %s314
      %p316 = scmp.lt.s32.totalorder %s21, 0
      %s317 = scalar_select %p316, %s21, 0
      %s318 = smul.addr %s317, 8
      %s319 = smul.addr %s318, 8
      %s320 = scalar_lea.vmem %s5, %s319
      %s321 = smul.u32 4, %s22
      %p322 = scmp.lt.s32.totalorder %s21, 0
      %s323 = scalar_select %p322, %s21, 0
      %p324 = scmp.lt.s32.totalorder %s321, 7
      %s325 = scalar_select %p324, %s321, 7
      %s326 = smul.addr %s323, 8
      %s327 = sadd.s32 %s325, %s326
      %s328 = smul.addr %s327, 8
      %s329 = scalar_lea.vmem %s6, %s328
      %s330 = smul.u32 4, %s22
      %v331 = vld [vmem:[%s309] sm:$0xff]
      %v332 = vld [vmem:[%s309 + $0x8] sm:$0xff]
      %v333 = vld [vmem:[%s309 + $0x10] sm:$0xff]
      %v334 = vld [vmem:[%s309 + $0x18] sm:$0xff]
      %v335 = vld [vmem:[%s0] sm:$0xff]
      %v336 = vld [vmem:[%s0 + $0x8] sm:$0xff]
      %v337 = vld [vmem:[%s0 + $0x10] sm:$0xff]
      %v338 = vld [vmem:[%s0 + $0x18] sm:$0xff]
      %v339 = vld [vmem:[%s0 + $0x20] sm:$0xff]
      %v340 = vld [vmem:[%s0 + $0x28] sm:$0xff]
      %v341 = vld [vmem:[%s0 + $0x30] sm:$0xff]
      %v342 = vld [vmem:[%s0 + $0x38] sm:$0xff]
      %v343 = vld [vmem:[%s0 + $0x40] sm:$0xff]
      %v344 = vld [vmem:[%s0 + $0x48] sm:$0xff]
      %v345 = vld [vmem:[%s0 + $0x50] sm:$0xff]
      %v346 = vld [vmem:[%s0 + $0x58] sm:$0xff]
      %v347 = vld [vmem:[%s0 + $0x60] sm:$0xff]
      %v348 = vld [vmem:[%s0 + $0x68] sm:$0xff]
      %v349 = vld [vmem:[%s0 + $0x70] sm:$0xff]
      %v350 = vld [vmem:[%s0 + $0x78] sm:$0xff]
      %351 = vmatprep.subr.mxu0 0.0
      %352 = vmatpush1.msra.mxu0 %v335
      %353 = vmatprep.subr.mxu0 0.0
      %354 = vmatpush1.msra.mxu0 %v336
      %355 = vmatprep.subr.mxu0 0.0
      %356 = vmatpush1.msra.mxu0 %v337
      %357 = vmatprep.subr.mxu0 0.0
      %358 = vmatpush1.msra.mxu0 %v338
      %359 = vmatprep.subr.mxu0 0.0
      %360 = vmatpush1.msra.mxu0 %v339
      %361 = vmatprep.subr.mxu0 0.0
      %362 = vmatpush1.msra.mxu0 %v340
      %363 = vmatprep.subr.mxu0 0.0
      %364 = vmatpush1.msra.mxu0 %v341
      %365 = vmatprep.subr.mxu0 0.0
      %366 = vmatpush1.msra.mxu0 %v342
      %367 = vmatprep.subr.mxu0 0.0
      %368 = vmatpush1.msra.mxu0 %v343
      %369 = vmatprep.subr.mxu0 0.0
      %370 = vmatpush1.msra.mxu0 %v344
      %371 = vmatprep.subr.mxu0 0.0
      %372 = vmatpush1.msra.mxu0 %v345
      %373 = vmatprep.subr.mxu0 0.0
      %374 = vmatpush1.msra.mxu0 %v346
      %375 = vmatprep.subr.mxu0 0.0
      %376 = vmatpush1.msra.mxu0 %v347
      %377 = vmatprep.subr.mxu0 0.0
      %378 = vmatpush1.msra.mxu0 %v348
      %379 = vmatprep.subr.mxu0 0.0
      %380 = vmatpush1.msra.mxu0 %v349
      %381 = vmatprep.subr.mxu0 0.0
      %382 = vmatpush1.msra.mxu0 %v350
      %383 = vmatprep.subr.mxu0 0.0
      %384 = vmatpush1.msra.mxu0 0.0
      %385 = vmatprep.subr.mxu0 0.0
      %386 = vmatpush1.msra.mxu0 0.0
      %387 = vmatprep.subr.mxu0 0.0
      %388 = vmatpush1.msra.mxu0 0.0
      %389 = vmatprep.subr.mxu0 0.0
      %390 = vmatpush1.msra.mxu0 0.0
      %391 = vmatprep.subr.mxu0 0.0
      %392 = vmatpush1.msra.mxu0 0.0
      %393 = vmatprep.subr.mxu0 0.0
      %394 = vmatpush1.msra.mxu0 0.0
      %395 = vmatprep.subr.mxu0 0.0
      %396 = vmatpush1.msra.mxu0 0.0
      %397 = vmatprep.subr.mxu0 0.0
      %398 = vmatpush1.msra.mxu0 0.0
      %399 = vmatprep.subr.mxu0 0.0
      %400 = vmatpush1.msra.mxu0 0.0
      %401 = vmatprep.subr.mxu0 0.0
      %402 = vmatpush1.msra.mxu0 0.0
      %403 = vmatprep.subr.mxu0 0.0
      %404 = vmatpush1.msra.mxu0 0.0
      %405 = vmatprep.subr.mxu0 0.0
      %406 = vmatpush1.msra.mxu0 0.0
      %407 = vmatprep.subr.mxu0 0.0
      %408 = vmatpush1.msra.mxu0 0.0
      %409 = vmatprep.subr.mxu0 0.0
      %410 = vmatpush1.msra.mxu0 0.0
      %411 = vmatprep.subr.mxu0 0.0
      %412 = vmatpush1.msra.mxu0 0.0
      %413 = vmatprep.subr.mxu0 0.0
      %414 = vmatpush1.msra.mxu0 0.0
      %415 = vmatprep.mubr.f32.mxu0 0.0
      %416 = vmatmul.mubr.f32.gmra.mrb[0].mxu0 %v331
      %v417 = vpop.f32.mrb[0].mxu0
      %v418 = vadd.f32 0.0, %v417
      %v419 = vpop.f32.mrb[0].mxu0
      %420 = vmatprep.mubr.f32.mxu0 0.0
      %421 = vmatmul.mubr.f32.gmra.mrb[0].mxu0 %v332
      %v422 = vpop.f32.mrb[0].mxu0
      %v423 = vadd.f32 0.0, %v422
      %v424 = vpop.f32.mrb[0].mxu0
      %425 = vmatprep.mubr.f32.mxu0 0.0
      %426 = vmatmul.mubr.f32.gmra.mrb[0].mxu0 %v333
      %v427 = vpop.f32.mrb[0].mxu0
      %v428 = vadd.f32 0.0, %v427
      %v429 = vpop.f32.mrb[0].mxu0
      %430 = vmatprep.mubr.f32.mxu0 0.0
      %431 = vmatmul.mubr.f32.gmra.mrb[0].mxu0 %v334
      %v432 = vpop.f32.mrb[0].mxu0
      %v433 = vadd.f32 0.0, %v432
      %v434 = vpop.f32.mrb[0].mxu0
      %435 = vdwg.mxu0
      %v436 = vmul.f32 %v418, 0.125
      %v437 = vmul.f32 %v423, 0.125
      %v438 = vmul.f32 %v428, 0.125
      %v439 = vmul.f32 %v433, 0.125
      %440 = vst [vmem:[#allocation2] sm:$0xff] %v436
      %441 = vst [vmem:[#allocation2 + $0x8] sm:$0xff] %v437
      %442 = vst [vmem:[#allocation2 + $0x10] sm:$0xff] %v438
      %443 = vst [vmem:[#allocation2 + $0x18] sm:$0xff] %v439
      %v444 = vld [vmem:[%s315] sm:$0xff]
      %v445 = vld [vmem:[%s315 + $0x8] sm:$0xff]
      %v446 = vld [vmem:[%s315 + $0x10] sm:$0xff]
      %v447 = vld [vmem:[%s315 + $0x18] sm:$0xff]
      %v448 = vld [vmem:[%s315 + $0x20] sm:$0xff]
      %v449 = vld [vmem:[%s315 + $0x28] sm:$0xff]
      %v450 = vld [vmem:[%s315 + $0x30] sm:$0xff]
      %v451 = vld [vmem:[%s315 + $0x38] sm:$0xff]
      %v452 = vld [vmem:[%s1] sm:$0xff]
      %v453 = vld [vmem:[%s1 + $0x8] sm:$0xff]
      %v454 = vld [vmem:[%s1 + $0x10] sm:$0xff]
      %v455 = vld [vmem:[%s1 + $0x18] sm:$0xff]
      %v456 = vld [vmem:[%s1 + $0x20] sm:$0xff]
      %v457 = vld [vmem:[%s1 + $0x28] sm:$0xff]
      %v458 = vld [vmem:[%s1 + $0x30] sm:$0xff]
      %v459 = vld [vmem:[%s1 + $0x38] sm:$0xff]
      %v460 = vld [vmem:[%s1 + $0x40] sm:$0xff]
      %v461 = vld [vmem:[%s1 + $0x48] sm:$0xff]
      %v462 = vld [vmem:[%s1 + $0x50] sm:$0xff]
      %v463 = vld [vmem:[%s1 + $0x58] sm:$0xff]
      %v464 = vld [vmem:[%s1 + $0x60] sm:$0xff]
      %v465 = vld [vmem:[%s1 + $0x68] sm:$0xff]
      %v466 = vld [vmem:[%s1 + $0x70] sm:$0xff]
      %v467 = vld [vmem:[%s1 + $0x78] sm:$0xff]
      %468 = vmatprep.subr.mxu0 0.0
      %469 = vmatpush1.msra.mxu0 %v452
      %470 = vmatprep.subr.mxu0 0.0
      %471 = vmatpush1.msra.mxu0 %v453
      %472 = vmatprep.subr.mxu0 0.0
      %473 = vmatpush1.msra.mxu0 %v454
      %474 = vmatprep.subr.mxu0 0.0
      %475 = vmatpush1.msra.mxu0 %v455
      %476 = vmatprep.subr.mxu0 0.0
      %477 = vmatpush1.msra.mxu0 %v456
      %478 = vmatprep.subr.mxu0 0.0
      %479 = vmatpush1.msra.mxu0 %v457
      %480 = vmatprep.subr.mxu0 0.0
      %481 = vmatpush1.msra.mxu0 %v458
      %482 = vmatprep.subr.mxu0 0.0
      %483 = vmatpush1.msra.mxu0 %v459
      %484 = vmatprep.subr.mxu0 0.0
      %485 = vmatpush1.msra.mxu0 %v460
      %486 = vmatprep.subr.mxu0 0.0
      %487 = vmatpush1.msra.mxu0 %v461
      %488 = vmatprep.subr.mxu0 0.0
      %489 = vmatpush1.msra.mxu0 %v462
      %490 = vmatprep.subr.mxu0 0.0
      %491 = vmatpush1.msra.mxu0 %v463
      %492 = vmatprep.subr.mxu0 0.0
      %493 = vmatpush1.msra.mxu0 %v464
      %494 = vmatprep.subr.mxu0 0.0
      %495 = vmatpush1.msra.mxu0 %v465
      %496 = vmatprep.subr.mxu0 0.0
      %497 = vmatpush1.msra.mxu0 %v466
      %498 = vmatprep.subr.mxu0 0.0
      %499 = vmatpush1.msra.mxu0 %v467
      %500 = vmatprep.subr.mxu0 0.0
      %501 = vmatpush1.msra.mxu0 0.0
      %502 = vmatprep.subr.mxu0 0.0
      %503 = vmatpush1.msra.mxu0 0.0
      %504 = vmatprep.subr.mxu0 0.0
      %505 = vmatpush1.msra.mxu0 0.0
      %506 = vmatprep.subr.mxu0 0.0
      %507 = vmatpush1.msra.mxu0 0.0
      %508 = vmatprep.subr.mxu0 0.0
      %509 = vmatpush1.msra.mxu0 0.0
      %510 = vmatprep.subr.mxu0 0.0
      %511 = vmatpush1.msra.mxu0 0.0
      %512 = vmatprep.subr.mxu0 0.0
      %513 = vmatpush1.msra.mxu0 0.0
      %514 = vmatprep.subr.mxu0 0.0
      %515 = vmatpush1.msra.mxu0 0.0
      %516 = vmatprep.subr.mxu0 0.0
      %517 = vmatpush1.msra.mxu0 0.0
      %518 = vmatprep.subr.mxu0 0.0
      %519 = vmatpush1.msra.mxu0 0.0
      %520 = vmatprep.subr.mxu0 0.0
      %521 = vmatpush1.msra.mxu0 0.0
      %522 = vmatprep.subr.mxu0 0.0
      %523 = vmatpush1.msra.mxu0 0.0
      %524 = vmatprep.subr.mxu0 0.0
      %525 = vmatpush1.msra.mxu0 0.0
      %526 = vmatprep.subr.mxu0 0.0
      %527 = vmatpush1.msra.mxu0 0.0
      %528 = vmatprep.subr.mxu0 0.0
      %529 = vmatpush1.msra.mxu0 0.0
      %530 = vmatprep.subr.mxu0 0.0
      %531 = vmatpush1.msra.mxu0 0.0
      %532 = vmatprep.mubr.f32.mxu0 0.0
      %533 = vmatmul.mubr.f32.gmra.mrb[0].mxu0 %v444
      %v534 = vpop.f32.mrb[0].mxu0
      %v535 = vadd.f32 0.0, %v534
      %v536 = vpop.f32.mrb[0].mxu0
      %537 = vmatprep.mubr.f32.mxu0 0.0
      %538 = vmatmul.mubr.f32.gmra.mrb[0].mxu0 %v445
      %v539 = vpop.f32.mrb[0].mxu0
      %v540 = vadd.f32 0.0, %v539
      %v541 = vpop.f32.mrb[0].mxu0
      %542 = vmatprep.mubr.f32.mxu0 0.0
      %543 = vmatmul.mubr.f32.gmra.mrb[0].mxu0 %v446
      %v544 = vpop.f32.mrb[0].mxu0
      %v545 = vadd.f32 0.0, %v544
      %v546 = vpop.f32.mrb[0].mxu0
      %547 = vmatprep.mubr.f32.mxu0 0.0
      %548 = vmatmul.mubr.f32.gmra.mrb[0].mxu0 %v447
      %v549 = vpop.f32.mrb[0].mxu0
      %v550 = vadd.f32 0.0, %v549
      %v551 = vpop.f32.mrb[0].mxu0
      %552 = vmatprep.mubr.f32.mxu0 0.0
      %553 = vmatmul.mubr.f32.gmra.mrb[0].mxu0 %v448
      %v554 = vpop.f32.mrb[0].mxu0
      %v555 = vadd.f32 0.0, %v554
      %v556 = vpop.f32.mrb[0].mxu0
      %557 = vmatprep.mubr.f32.mxu0 0.0
      %558 = vmatmul.mubr.f32.gmra.mrb[0].mxu0 %v449
      %v559 = vpop.f32.mrb[0].mxu0
      %v560 = vadd.f32 0.0, %v559
      %v561 = vpop.f32.mrb[0].mxu0
      %562 = vmatprep.mubr.f32.mxu0 0.0
      %563 = vmatmul.mubr.f32.gmra.mrb[0].mxu0 %v450
      %v564 = vpop.f32.mrb[0].mxu0
      %v565 = vadd.f32 0.0, %v564
      %v566 = vpop.f32.mrb[0].mxu0
      %567 = vmatprep.mubr.f32.mxu0 0.0
      %568 = vmatmul.mubr.f32.gmra.mrb[0].mxu0 %v451
      %v569 = vpop.f32.mrb[0].mxu0
      %v570 = vadd.f32 0.0, %v569
      %v571 = vpop.f32.mrb[0].mxu0
      %572 = vdwg.mxu0
      %v573 = vld [vmem:[%s320] sm:$0xff]
      %v574 = vld [vmem:[%s320 + $0x8] sm:$0xff]
      %v575 = vld [vmem:[%s320 + $0x10] sm:$0xff]
      %v576 = vld [vmem:[%s320 + $0x18] sm:$0xff]
      %v577 = vld [vmem:[%s320 + $0x20] sm:$0xff]
      %v578 = vld [vmem:[%s320 + $0x28] sm:$0xff]
      %v579 = vld [vmem:[%s320 + $0x30] sm:$0xff]
      %v580 = vld [vmem:[%s320 + $0x38] sm:$0xff]
      %v581 = vld [vmem:[%s2] sm:$0xff]
      %v582 = vld [vmem:[%s2 + $0x8] sm:$0xff]
      %v583 = vld [vmem:[%s2 + $0x10] sm:$0xff]
      %v584 = vld [vmem:[%s2 + $0x18] sm:$0xff]
      %v585 = vld [vmem:[%s2 + $0x20] sm:$0xff]
      %v586 = vld [vmem:[%s2 + $0x28] sm:$0xff]
      %v587 = vld [vmem:[%s2 + $0x30] sm:$0xff]
      %v588 = vld [vmem:[%s2 + $0x38] sm:$0xff]
      %v589 = vld [vmem:[%s2 + $0x40] sm:$0xff]
      %v590 = vld [vmem:[%s2 + $0x48] sm:$0xff]
      %v591 = vld [vmem:[%s2 + $0x50] sm:$0xff]
      %v592 = vld [vmem:[%s2 + $0x58] sm:$0xff]
      %v593 = vld [vmem:[%s2 + $0x60] sm:$0xff]
      %v594 = vld [vmem:[%s2 + $0x68] sm:$0xff]
      %v595 = vld [vmem:[%s2 + $0x70] sm:$0xff]
      %v596 = vld [vmem:[%s2 + $0x78] sm:$0xff]
      %597 = vmatprep.subr.mxu0 0.0
      %598 = vmatpush1.msra.mxu0 %v581
      %599 = vmatprep.subr.mxu0 0.0
      %600 = vmatpush1.msra.mxu0 %v582
      %601 = vmatprep.subr.mxu0 0.0
      %602 = vmatpush1.msra.mxu0 %v583
      %603 = vmatprep.subr.mxu0 0.0
      %604 = vmatpush1.msra.mxu0 %v584
      %605 = vmatprep.subr.mxu0 0.0
      %606 = vmatpush1.msra.mxu0 %v585
      %607 = vmatprep.subr.mxu0 0.0
      %608 = vmatpush1.msra.mxu0 %v586
      %609 = vmatprep.subr.mxu0 0.0
      %610 = vmatpush1.msra.mxu0 %v587
      %611 = vmatprep.subr.mxu0 0.0
      %612 = vmatpush1.msra.mxu0 %v588
      %613 = vmatprep.subr.mxu0 0.0
      %614 = vmatpush1.msra.mxu0 %v589
      %615 = vmatprep.subr.mxu0 0.0
      %616 = vmatpush1.msra.mxu0 %v590
      %617 = vmatprep.subr.mxu0 0.0
      %618 = vmatpush1.msra.mxu0 %v591
      %619 = vmatprep.subr.mxu0 0.0
      %620 = vmatpush1.msra.mxu0 %v592
      %621 = vmatprep.subr.mxu0 0.0
      %622 = vmatpush1.msra.mxu0 %v593
      %623 = vmatprep.subr.mxu0 0.0
      %624 = vmatpush1.msra.mxu0 %v594
      %625 = vmatprep.subr.mxu0 0.0
      %626 = vmatpush1.msra.mxu0 %v595
      %627 = vmatprep.subr.mxu0 0.0
      %628 = vmatpush1.msra.mxu0 %v596
      %629 = vmatprep.subr.mxu0 0.0
      %630 = vmatpush1.msra.mxu0 0.0
      %631 = vmatprep.subr.mxu0 0.0
      %632 = vmatpush1.msra.mxu0 0.0
      %633 = vmatprep.subr.mxu0 0.0
      %634 = vmatpush1.msra.mxu0 0.0
      %635 = vmatprep.subr.mxu0 0.0
      %636 = vmatpush1.msra.mxu0 0.0
      %637 = vmatprep.subr.mxu0 0.0
      %638 = vmatpush1.msra.mxu0 0.0
      %639 = vmatprep.subr.mxu0 0.0
      %640 = vmatpush1.msra.mxu0 0.0
      %641 = vmatprep.subr.mxu0 0.0
      %642 = vmatpush1.msra.mxu0 0.0
      %643 = vmatprep.subr.mxu0 0.0
      %644 = vmatpush1.msra.mxu0 0.0
      %645 = vmatprep.subr.mxu0 0.0
      %646 = vmatpush1.msra.mxu0 0.0
      %647 = vmatprep.subr.mxu0 0.0
      %648 = vmatpush1.msra.mxu0 0.0
      %649 = vmatprep.subr.mxu0 0.0
      %650 = vmatpush1.msra.mxu0 0.0
      %651 = vmatprep.subr.mxu0 0.0
      %652 = vmatpush1.msra.mxu0 0.0
      %653 = vmatprep.subr.mxu0 0.0
      %654 = vmatpush1.msra.mxu0 0.0
      %655 = vmatprep.subr.mxu0 0.0
      %656 = vmatpush1.msra.mxu0 0.0
      %657 = vmatprep.subr.mxu0 0.0
      %658 = vmatpush1.msra.mxu0 0.0
      %659 = vmatprep.subr.mxu0 0.0
      %660 = vmatpush1.msra.mxu0 0.0
      %661 = vmatprep.mubr.f32.mxu0 0.0
      %662 = vmatmul.mubr.f32.gmra.mrb[0].mxu0 %v573
      %v663 = vpop.f32.mrb[0].mxu0
      %v664 = vadd.f32 0.0, %v663
      %v665 = vpop.f32.mrb[0].mxu0
      %666 = vmatprep.mubr.f32.mxu0 0.0
      %667 = vmatmul.mubr.f32.gmra.mrb[0].mxu0 %v574
      %v668 = vpop.f32.mrb[0].mxu0
      %v669 = vadd.f32 0.0, %v668
      %v670 = vpop.f32.mrb[0].mxu0
      %671 = vmatprep.mubr.f32.mxu0 0.0
      %672 = vmatmul.mubr.f32.gmra.mrb[0].mxu0 %v575
      %v673 = vpop.f32.mrb[0].mxu0
      %v674 = vadd.f32 0.0, %v673
      %v675 = vpop.f32.mrb[0].mxu0
      %676 = vmatprep.mubr.f32.mxu0 0.0
      %677 = vmatmul.mubr.f32.gmra.mrb[0].mxu0 %v576
      %v678 = vpop.f32.mrb[0].mxu0
      %v679 = vadd.f32 0.0, %v678
      %v680 = vpop.f32.mrb[0].mxu0
      %681 = vmatprep.mubr.f32.mxu0 0.0
      %682 = vmatmul.mubr.f32.gmra.mrb[0].mxu0 %v577
      %v683 = vpop.f32.mrb[0].mxu0
      %v684 = vadd.f32 0.0, %v683
      %v685 = vpop.f32.mrb[0].mxu0
      %686 = vmatprep.mubr.f32.mxu0 0.0
      %687 = vmatmul.mubr.f32.gmra.mrb[0].mxu0 %v578
      %v688 = vpop.f32.mrb[0].mxu0
      %v689 = vadd.f32 0.0, %v688
      %v690 = vpop.f32.mrb[0].mxu0
      %691 = vmatprep.mubr.f32.mxu0 0.0
      %692 = vmatmul.mubr.f32.gmra.mrb[0].mxu0 %v579
      %v693 = vpop.f32.mrb[0].mxu0
      %v694 = vadd.f32 0.0, %v693
      %v695 = vpop.f32.mrb[0].mxu0
      %696 = vmatprep.mubr.f32.mxu0 0.0
      %697 = vmatmul.mubr.f32.gmra.mrb[0].mxu0 %v580
      %v698 = vpop.f32.mrb[0].mxu0
      %v699 = vadd.f32 0.0, %v698
      %v700 = vpop.f32.mrb[0].mxu0
      %701 = vdwg.mxu0
      loop: start=0, step=1, limit=4
      $region45: #{self_attention.1} parent=43 // loop_pre_header
        _
      $region46: #{self_attention.1} parent=43 // loop_header
        %s703 = sphi 0, %s707
        %p704 = scmp.ge.s32.totalorder %s703, 4
      $region47: #{self_attention.1} parent=43 // loop_header_branch
        %706 = sbr.rel (%p704) target = $region51
      $region48: #{self_attention.1} parent=43 // loop_body
        %s708 = smul.u32 %s703, 8
        %s709 = scalar_lea.vmem [#allocation2], %s708
        %v710 = vld [vmem:[%s709] sm:$0xff]
        %v711 = vmul.f32 %v710, %v535
        %v712 = vmul.f32 %v710, %v540
        %v713 = vmul.f32 %v710, %v545
        %v714 = vmul.f32 %v710, %v550
        %v715 = vmul.f32 %v710, %v555
        %v716 = vmul.f32 %v710, %v560
        %v717 = vmul.f32 %v710, %v565
        %v718 = vmul.f32 %v710, %v570
        %v719 = vrot.slane %v711, 4
        %v720 = vadd.f32 %v711, %v719
        %v721 = vrot.slane %v720, 2
        %v722 = vadd.f32 %v720, %v721
        %v723 = vrot.slane %v722, 1
        %v724 = vadd.f32 %v722, %v723
        %v725 = vrot.slane %v712, 4
        %v726 = vadd.f32 %v712, %v725
        %v727 = vrot.slane %v726, 2
        %v728 = vadd.f32 %v726, %v727
        %v729 = vrot.slane %v728, 1
        %v730 = vadd.f32 %v728, %v729
        %v731 = vrot.slane %v713, 4
        %v732 = vadd.f32 %v713, %v731
        %v733 = vrot.slane %v732, 2
        %v734 = vadd.f32 %v732, %v733
        %v735 = vrot.slane %v734, 1
        %v736 = vadd.f32 %v734, %v735
        %v737 = vrot.slane %v714, 4
        %v738 = vadd.f32 %v714, %v737
        %v739 = vrot.slane %v738, 2
        %v740 = vadd.f32 %v738, %v739
        %v741 = vrot.slane %v740, 1
        %v742 = vadd.f32 %v740, %v741
        %v743 = vrot.slane %v715, 4
        %v744 = vadd.f32 %v715, %v743
        %v745 = vrot.slane %v744, 2
        %v746 = vadd.f32 %v744, %v745
        %v747 = vrot.slane %v746, 1
        %v748 = vadd.f32 %v746, %v747
        %v749 = vrot.slane %v716, 4
        %v750 = vadd.f32 %v716, %v749
        %v751 = vrot.slane %v750, 2
        %v752 = vadd.f32 %v750, %v751
        %v753 = vrot.slane %v752, 1
        %v754 = vadd.f32 %v752, %v753
        %v755 = vrot.slane %v717, 4
        %v756 = vadd.f32 %v717, %v755
        %v757 = vrot.slane %v756, 2
        %v758 = vadd.f32 %v756, %v757
        %v759 = vrot.slane %v758, 1
        %v760 = vadd.f32 %v758, %v759
        %v761 = vrot.slane %v718, 4
        %v762 = vadd.f32 %v718, %v761
        %v763 = vrot.slane %v762, 2
        %v764 = vadd.f32 %v762, %v763
        %v765 = vrot.slane %v764, 1
        %v766 = vadd.f32 %v764, %v765
        %vm775 = vcmask 1041409
        %v776 = vsel %vm775, %v730, %v724
        %vm777 = vcmask 1042434
        %v778 = vsel %vm777, %v736, %v776
        %vm779 = vcmask 1043459
        %v780 = vsel %vm779, %v742, %v778
        %vm781 = vcmask 1044484
        %v782 = vsel %vm781, %v748, %v780
        %vm783 = vcmask 1045509
        %v784 = vsel %vm783, %v754, %v782
        %vm785 = vcmask 1046534
        %v786 = vsel %vm785, %v760, %v784
        %vm787 = vcmask 1047559
        %v788 = vsel %vm787, %v766, %v786
        %vm790 = vcmask 523264
        %v791 = vsel %vm790, %v788, -inf
        %792 = vmax.xlane.f32.xlu0 %v791
        %v793 = vpop.xlane.xlu0 %792
        %v795 = vrot.slane %v793, 1
        %v796 = vrot.slane %v793, 2
        %v797 = vrot.slane %v793, 3
        %v798 = vrot.slane %v793, 4
        %v799 = vrot.slane %v793, 5
        %v800 = vrot.slane %v793, 6
        %v801 = vrot.slane %v793, 7
        %v810 = vsub.f32 %v724, %v793
        %v811 = vsub.f32 %v730, %v795
        %v812 = vsub.f32 %v736, %v796
        %v813 = vsub.f32 %v742, %v797
        %v814 = vsub.f32 %v748, %v798
        %v815 = vsub.f32 %v754, %v799
        %v816 = vsub.f32 %v760, %v800
        %v817 = vsub.f32 %v766, %v801
        %v818 = vmul.f32 %v810, 1.442695
        %v819 = vpow.pop %v818
        %v820 = vmul.f32 %v811, 1.442695
        %v821 = vpow.pop %v820
        %v822 = vmul.f32 %v812, 1.442695
        %v823 = vpow.pop %v822
        %v824 = vmul.f32 %v813, 1.442695
        %v825 = vpow.pop %v824
        %v826 = vmul.f32 %v814, 1.442695
        %v827 = vpow.pop %v826
        %v828 = vmul.f32 %v815, 1.442695
        %v829 = vpow.pop %v828
        %v830 = vmul.f32 %v816, 1.442695
        %v831 = vpow.pop %v830
        %v832 = vmul.f32 %v817, 1.442695
        %v833 = vpow.pop %v832
        %v842 = vrot.slane %v821, 7
        %v843 = vsel %vm775, %v842, %v819
        %v844 = vrot.slane %v823, 6
        %v845 = vsel %vm777, %v844, %v843
        %v846 = vrot.slane %v825, 5
        %v847 = vsel %vm779, %v846, %v845
        %v848 = vrot.slane %v827, 4
        %v849 = vsel %vm781, %v848, %v847
        %v850 = vrot.slane %v829, 3
        %v851 = vsel %vm783, %v850, %v849
        %v852 = vrot.slane %v831, 2
        %v853 = vsel %vm785, %v852, %v851
        %v854 = vrot.slane %v833, 1
        %v855 = vsel %vm787, %v854, %v853
        %v857 = vsel %vm790, %v855, 0.0
        %858 = vadd.xlane.f32.xlu0 %v857
        %v859 = vpop.xlane.xlu0 %858
        %v861 = vrot.slane %v859, 1
        %v862 = vrot.slane %v859, 2
        %v863 = vrot.slane %v859, 3
        %v864 = vrot.slane %v859, 4
        %v865 = vrot.slane %v859, 5
        %v866 = vrot.slane %v859, 6
        %v867 = vrot.slane %v859, 7
        %v876 = vrcp.pop %v859
        %v877 = vmul.f32 %v819, %v876
        %v878 = vrcp.pop %v861
        %v879 = vmul.f32 %v821, %v878
        %v880 = vrcp.pop %v862
        %v881 = vmul.f32 %v823, %v880
        %v882 = vrcp.pop %v863
        %v883 = vmul.f32 %v825, %v882
        %v884 = vrcp.pop %v864
        %v885 = vmul.f32 %v827, %v884
        %v886 = vrcp.pop %v865
        %v887 = vmul.f32 %v829, %v886
        %v888 = vrcp.pop %v866
        %v889 = vmul.f32 %v831, %v888
        %v890 = vrcp.pop %v867
        %v891 = vmul.f32 %v833, %v890
        %vm892 = vcmask 1048064
        %v893 = vsel %vm892, %v788, -inf
        %894 = vmax.xlane.f32.xlu0 %v893
        %v895 = vpop.xlane.xlu0 %894
        %v897 = vrot.slane %v895, 1
        %v898 = vrot.slane %v895, 2
        %v899 = vrot.slane %v895, 3
        %v900 = vrot.slane %v895, 4
        %v901 = vrot.slane %v895, 5
        %v902 = vrot.slane %v895, 6
        %v903 = vrot.slane %v895, 7
        %v912 = vsub.f32 %v724, %v895
        %v913 = vsub.f32 %v730, %v897
        %v914 = vsub.f32 %v736, %v898
        %v915 = vsub.f32 %v742, %v899
        %v916 = vsub.f32 %v748, %v900
        %v917 = vsub.f32 %v754, %v901
        %v918 = vsub.f32 %v760, %v902
        %v919 = vsub.f32 %v766, %v903
        %v920 = vmul.f32 %v912, 1.442695
        %v921 = vpow.pop %v920
        %v922 = vmul.f32 %v913, 1.442695
        %v923 = vpow.pop %v922
        %v924 = vmul.f32 %v914, 1.442695
        %v925 = vpow.pop %v924
        %v926 = vmul.f32 %v915, 1.442695
        %v927 = vpow.pop %v926
        %v928 = vmul.f32 %v916, 1.442695
        %v929 = vpow.pop %v928
        %v930 = vmul.f32 %v917, 1.442695
        %v931 = vpow.pop %v930
        %v932 = vmul.f32 %v918, 1.442695
        %v933 = vpow.pop %v932
        %v934 = vmul.f32 %v919, 1.442695
        %v935 = vpow.pop %v934
        %v944 = vrot.slane %v923, 7
        %v945 = vsel %vm775, %v944, %v921
        %v946 = vrot.slane %v925, 6
        %v947 = vsel %vm777, %v946, %v945
        %v948 = vrot.slane %v927, 5
        %v949 = vsel %vm779, %v948, %v947
        %v950 = vrot.slane %v929, 4
        %v951 = vsel %vm781, %v950, %v949
        %v952 = vrot.slane %v931, 3
        %v953 = vsel %vm783, %v952, %v951
        %v954 = vrot.slane %v933, 2
        %v955 = vsel %vm785, %v954, %v953
        %v956 = vrot.slane %v935, 1
        %v957 = vsel %vm787, %v956, %v955
        %958 = vrot.lane.b32.xlu0 %v957, 64
        %v959 = vpop.permute.xlu0 %958
        %v961 = vsel %vm790, %v959, 0.0
        %962 = vadd.xlane.f32.xlu0 %v961
        %v963 = vpop.xlane.xlu0 %962
        %v965 = vrot.slane %v963, 1
        %v966 = vrot.slane %v963, 2
        %v967 = vrot.slane %v963, 3
        %v968 = vrot.slane %v963, 4
        %v969 = vrot.slane %v963, 5
        %v970 = vrot.slane %v963, 6
        %v971 = vrot.slane %v963, 7
        %v980 = vrcp.pop %v963
        %v981 = vmul.f32 %v921, %v980
        %v982 = vrcp.pop %v965
        %v983 = vmul.f32 %v923, %v982
        %v984 = vrcp.pop %v966
        %v985 = vmul.f32 %v925, %v984
        %v986 = vrcp.pop %v967
        %v987 = vmul.f32 %v927, %v986
        %v988 = vrcp.pop %v968
        %v989 = vmul.f32 %v929, %v988
        %v990 = vrcp.pop %v969
        %v991 = vmul.f32 %v931, %v990
        %v992 = vrcp.pop %v970
        %v993 = vmul.f32 %v933, %v992
        %v994 = vrcp.pop %v971
        %v995 = vmul.f32 %v935, %v994
        %v1004 = vrot.slane %v879, 7
        %v1005 = vsel %vm775, %v1004, %v877
        %v1006 = vrot.slane %v881, 6
        %v1007 = vsel %vm777, %v1006, %v1005
        %v1008 = vrot.slane %v883, 5
        %v1009 = vsel %vm779, %v1008, %v1007
        %v1010 = vrot.slane %v885, 4
        %v1011 = vsel %vm781, %v1010, %v1009
        %v1012 = vrot.slane %v887, 3
        %v1013 = vsel %vm783, %v1012, %v1011
        %v1014 = vrot.slane %v889, 2
        %v1015 = vsel %vm785, %v1014, %v1013
        %v1016 = vrot.slane %v891, 1
        %v1017 = vsel %vm787, %v1016, %v1015
        %v1027 = vrot.slane %v983, 7
        %v1028 = vsel %vm775, %v1027, %v981
        %v1029 = vrot.slane %v985, 6
        %v1030 = vsel %vm777, %v1029, %v1028
        %v1031 = vrot.slane %v987, 5
        %v1032 = vsel %vm779, %v1031, %v1030
        %v1033 = vrot.slane %v989, 4
        %v1034 = vsel %vm781, %v1033, %v1032
        %v1035 = vrot.slane %v991, 3
        %v1036 = vsel %vm783, %v1035, %v1034
        %v1037 = vrot.slane %v993, 2
        %v1038 = vsel %vm785, %v1037, %v1036
        %v1039 = vrot.slane %v995, 1
        %v1040 = vsel %vm787, %v1039, %v1038
        %v1042 = vsel %vm790, %v1017, %v1040
        %v1044 = vcombine.high %v1042, %v1042
        %v1046 = vunpack.c.l.s4 1966171168
        %v1047 = vunpack.c.0.s8 %v1046
        %v1048 = vlaneseq
        %v1049 = vshrl.u32 %v1048, 7
        %v1050 = vsub.s32 %v1047, %v1049
        %v1051 = vrot.slane %v1042, %v1050
        %v1053 = vunpack.c.l.s4 1966171168
        %v1054 = vunpack.c.0.s8 %v1053
        %v1055 = vlaneseq
        %v1056 = vshrl.u32 %v1055, 7
        %v1057 = vsub.s32 %v1054, %v1056
        %v1058 = vrot.slane %v1044, %v1057
        %v1059 = vcombine.high %v1051, %v1051
        %v1060 = vcombine.high %v1058, %v1058
        %v1062 = vunpack.c.l.s4 1966171168
        %v1063 = vunpack.c.0.s8 %v1062
        %v1064 = vlaneseq
        %v1065 = vshrl.u32 %v1064, 7
        %v1066 = vsub.s32 %v1063, %v1065
        %v1067 = vrot.slane %v1051, %v1066
        %v1069 = vunpack.c.l.s4 1966171168
        %v1070 = vunpack.c.0.s8 %v1069
        %v1071 = vlaneseq
        %v1072 = vshrl.u32 %v1071, 7
        %v1073 = vsub.s32 %v1070, %v1072
        %v1074 = vrot.slane %v1058, %v1073
        %v1076 = vunpack.c.l.s4 1966171168
        %v1077 = vunpack.c.0.s8 %v1076
        %v1078 = vlaneseq
        %v1079 = vshrl.u32 %v1078, 7
        %v1080 = vsub.s32 %v1077, %v1079
        %v1081 = vrot.slane %v1059, %v1080
        %v1083 = vunpack.c.l.s4 1966171168
        %v1084 = vunpack.c.0.s8 %v1083
        %v1085 = vlaneseq
        %v1086 = vshrl.u32 %v1085, 7
        %v1087 = vsub.s32 %v1084, %v1086
        %v1088 = vrot.slane %v1060, %v1087
        %v1089 = vcombine.high %v1067, %v1067
        %v1090 = vcombine.high %v1074, %v1074
        %v1091 = vcombine.high %v1081, %v1081
        %v1092 = vcombine.high %v1088, %v1088
        %v1093 = vlaneseq
        %v1094 = vshrl.u32 %v1093, 7
        %v1095 = vsub.s32 0, %v1094
        %v1096 = vrot.slane %v1067, %v1095
        %v1097 = vlaneseq
        %v1098 = vshrl.u32 %v1097, 7
        %v1099 = vsub.s32 0, %v1098
        %v1100 = vrot.slane %v1081, %v1099
        %v1101 = vlaneseq
        %v1102 = vshrl.u32 %v1101, 7
        %v1103 = vsub.s32 0, %v1102
        %v1104 = vrot.slane %v1089, %v1103
        %v1105 = vlaneseq
        %v1106 = vshrl.u32 %v1105, 7
        %v1107 = vsub.s32 0, %v1106
        %v1108 = vrot.slane %v1091, %v1107
        %v1109 = vlaneseq
        %v1110 = vshrl.u32 %v1109, 7
        %v1111 = vsub.s32 0, %v1110
        %v1112 = vrot.slane %v1074, %v1111
        %v1113 = vlaneseq
        %v1114 = vshrl.u32 %v1113, 7
        %v1115 = vsub.s32 0, %v1114
        %v1116 = vrot.slane %v1088, %v1115
        %v1117 = vlaneseq
        %v1118 = vshrl.u32 %v1117, 7
        %v1119 = vsub.s32 0, %v1118
        %v1120 = vrot.slane %v1090, %v1119
        %v1121 = vlaneseq
        %v1122 = vshrl.u32 %v1121, 7
        %v1123 = vsub.s32 0, %v1122
        %v1124 = vrot.slane %v1092, %v1123
        %v1133 = vmul.f32 %v1096, %v664
        %v1134 = vmul.f32 %v1100, %v669
        %v1135 = vmul.f32 %v1104, %v674
        %v1136 = vmul.f32 %v1108, %v679
        %v1137 = vmul.f32 %v1112, %v684
        %v1138 = vmul.f32 %v1116, %v689
        %v1139 = vmul.f32 %v1120, %v694
        %v1140 = vmul.f32 %v1124, %v699
        %v1141 = vadd.f32 %v1133, %v1134
        %v1142 = vadd.f32 %v1141, %v1135
        %v1143 = vadd.f32 %v1142, %v1136
        %v1144 = vadd.f32 %v1143, %v1137
        %v1145 = vadd.f32 %v1144, %v1138
        %v1146 = vadd.f32 %v1145, %v1139
        %v1147 = vadd.f32 %v1146, %v1140
        %s1148 = scalar_lea.vmem %s329, %s708
        %1149 = vst [vmem:[%s1148] sm:$0xff] %v1147
      $region49: #{self_attention.1} parent=43 // loop_footer
        %s707 = sadd.s32 1, %s703
      $region50: #{self_attention.1} parent=43 // loop_footer_branch
        %702 = sbr.rel target = $region46
      $region51: #{self_attention.1} parent=43 // loop_exit
        _
      %s1150 = smul.u32 4, %s22
      %p1151 = scmp.lt.s32.totalorder %s21, 0
      %s1152 = scalar_select %p1151, %s21, 0
      %p1153 = scmp.lt.s32.totalorder %s1150, 7
      %s1154 = scalar_select %p1153, %s1150, 7
      %s1155 = smul.addr %s1152, 8
      %s1156 = sadd.s32 %s1154, %s1155
      %s1157 = smul.addr %s1156, 8
      %s1158 = scalar_lea.vmem %s6, %s1157
      // Predicated region
      $region52: #{self_attention.1} parent=43 // pred_check
        %p1159 = pneg %p192
      $region53: #{self_attention.1} parent=43 // pred_check_branch
        %1161 = sbr.rel (%p1159) target = $region55
      $region54: #{self_attention.1} parent=43 // pred_region
        %s1162 = smul.u32 4, %s22
      $region55: #{self_attention.1} parent=43 // pred_fallthru
        _
    $region44: #{self_attention.1} parent=5 // pred_fallthru
      _
    %p1163 = scmp.le.s32.totalorder 2, %s12
    // Predicated region
    $region56: #{self_attention.1} parent=5 // pred_check
      %p1164 = pneg %p1163
    $region57: #{self_attention.1} parent=5 // pred_check_branch
      %1166 = sbr.rel (%p1164) target = $region59
    $region58: #{self_attention.1} parent=5 // pred_region
      %s1167 = ssub.s32 %s12, 2
      // Predicated region
      $region60: #{self_attention.1} parent=58 // pred_check
        %p1168 = pneg %p198
      $region61: #{self_attention.1} parent=58 // pred_check_branch
        %1170 = sbr.rel (%p1168) target = $region63
      $region62: #{self_attention.1} parent=58 // pred_region
        %s1171 = smul.u32 4, %s24
        %p1172 = scmp.lt.s32.totalorder %s23, 0
        %s1173 = scalar_select %p1172, %s23, 0
        %p1174 = scmp.lt.s32.totalorder %s1171, 7
        %s1175 = scalar_select %p1174, %s1171, 7
        %s1176 = smul.addr %s1173, 8
        %s1177 = sadd.s32 %s1175, %s1176
        %s1178 = smul.addr %s1177, 8
        %s1179 = scalar_lea.vmem %s6, %s1178
      $region63: #{self_attention.1} parent=58 // pred_fallthru
        _
    $region59: #{self_attention.1} parent=5 // pred_fallthru
      _
  $region6: #{self_attention.1} parent=0 // loop_footer
    %s16 = sadd.s32 1, %s12
  $region7: #{self_attention.1} parent=0 // loop_footer_branch
    %11 = sbr.rel target = $region3
  $region8: #{self_attention.1} parent=0 // loop_exit
    _

</llo_original>
